<compile_context>
chip_gen: v6e
topology: v6e:2x2x1
jax: 0.10.0
libtpu: 0.0.40
codegen_flags: <defaults>
</compile_context>

<pallas_src>
import jax
import jax.numpy as jnp
from jax.experimental import pallas as pl
from jax.experimental.pallas import tpu as pltpu


def _round_up(x, m):
    return (x + m - 1) // m * m


def _vmem_budget_bytes():
    """Generation-aware usable-VMEM budget for the kernel working set."""
    budget = 48 * 1024 * 1024  # conservative default: fits v7x's 64 MiB physical VMEM
    try:
        dev = jax.devices()[0]
        if dev.platform == "tpu":
            try:
                cap = int(pltpu.get_tpu_info().vmem_capacity_bytes)
            except Exception:
                cap = (64 * 1024 * 1024 if "v7" in dev.device_kind.lower()
                       else 128 * 1024 * 1024)
            budget = cap * 3 // 4  # ~96 MiB on v5e/v6e, ~48 MiB on v7x
    except Exception:
        pass
    return budget


def _pick_tm(n_rows, block_rows):
    """Row-tile size: >=2 grid steps when possible, 256-aligned when large."""
    if n_rows <= 16:
        return n_rows  # single full-extent row block (block dim == array dim is legal)
    tm = min(block_rows, _round_up(pl.cdiv(n_rows, 2), 8))
    if tm >= 256:
        tm = (tm // 256) * 256  # match the 256x256 MXU on v6e/v7x
    else:
        tm = _round_up(tm, 8)
    return max(tm, 8)


def _make_fe1_kernel(apply_dropout, compute_dtype):
    def kernel(*refs):
        if apply_dropout:
            x_ref, w1_ref, b1_ref, w2_ref, b2_ref, mask_ref, out_ref = refs
        else:
            x_ref, w1_ref, b1_ref, w2_ref, b2_ref, out_ref = refs

        # Layer 1: bf16 MXU matmul with f32 accumulation; bias + ReLU in f32 (VPU).
        x = x_ref[...].astype(compute_dtype)
        h = jnp.dot(x, w1_ref[...], preferred_element_type=jnp.float32)
        h = jnp.maximum(h + b1_ref[...], 0.0)

        if apply_dropout:
            h = h * mask_ref[...]  # inverted-dropout scale tile: 0 or 1/(1-p)

        # Layer 2: bf16 MXU matmul, f32 accumulation, bias + ReLU, lane-dense store.
        o = jnp.dot(h.astype(compute_dtype), w2_ref[...],
                    preferred_element_type=jnp.float32)
        out_ref[...] = jnp.maximum(o + b2_ref[...], 0.0).astype(out_ref.dtype)

    return kernel


def pack_fe1_params(w1, b1, w2, b2, compute_dtype=jnp.bfloat16):
    """One-time packing (hoisted out of the forward path): transpose torch-layout
    weights to (in, out) and pad out-feature dims to multiples of 128."""
    n_h0, n_input = w1.shape
    n_h1 = w2.shape[0]
    hp = _round_up(n_h0, 128)
    op = _round_up(n_h1, 128)
    w1p = jnp.zeros((n_input, hp), compute_dtype).at[:, :n_h0].set(w1.T.astype(compute_dtype))
    b1p = jnp.zeros((1, hp), jnp.float32).at[0, :n_h0].set(b1.astype(jnp.float32))
    w2p = jnp.zeros((hp, op), compute_dtype).at[:n_h0, :n_h1].set(w2.T.astype(compute_dtype))
    b2p = jnp.zeros((1, op), jnp.float32).at[0, :n_h1].set(b2.astype(jnp.float32))
    return dict(w1p=w1p, b1p=b1p, w2p=w2p, b2p=b2p,
                n_input=n_input, n_h0=n_h0, n_h1=n_h1, hp=hp, op=op,
                compute_dtype=compute_dtype)


def make_dropout_mask(key, dropout_p, n_rows, n_cols):
    """Inverted-dropout scale mask (0 or 1/(1-p)), reproducible from a jax.random key."""
    keep = jax.random.bernoulli(key, 1.0 - dropout_p, (n_rows, n_cols))
    return keep.astype(jnp.float32) * jnp.float32(1.0 / (1.0 - dropout_p))


def fe1_forward(x, params, *, dropout_p=0.0, dropout_key=None, block_rows=512,
                out_dtype=jnp.float32):
    """FE1 forward.  x: [N, n_input]; params from pack_fe1_params; returns [N, n_h1]."""
    n_rows, n_input = x.shape
    assert n_input == params["n_input"]
    hp, op, n_h1 = params["hp"], params["op"], params["n_h1"]
    compute_dtype = params["compute_dtype"]
    apply_dropout = float(dropout_p) > 0.0

    x_bytes = x.dtype.itemsize
    w_bytes = jnp.dtype(compute_dtype).itemsize
    out_bytes = jnp.dtype(out_dtype).itemsize

    # Weights are VMEM-resident across all grid steps (constant index_map); count them
    # twice to stay safe under pipeline buffering.
    weight_bytes = 2 * (n_input * hp * w_bytes + hp * op * w_bytes + (hp + op) * 4)
    budget = _vmem_budget_bytes()
    if weight_bytes > budget:
        # TODO(synk): add a hidden-dim tiling fallback (reduction grid axis + f32 VMEM
        # accumulator) for weight sets that do not fit VMEM-resident (notably v7x 64 MiB).
        raise NotImplementedError("FE1 weights exceed the VMEM budget; hidden-dim tiling "
                                  "is not implemented.")

    def working_set(tm):
        per_tile = tm * (n_input * x_bytes + op * out_bytes)
        if apply_dropout:
            per_tile += tm * hp * 4
        temps = tm * (hp * 6 + op * 4)  # f32 + bf16 hidden, f32 output accumulator
        return weight_bytes + 2 * per_tile + temps  # 2x: double-buffered row tiles

    tm = _pick_tm(n_rows, block_rows)
    tm_floor = min(tm, 128)  # never collapse to tiny row tiles (MXU / per-step overhead)
    while working_set(tm) > budget and tm > tm_floor:
        tm = max(tm_floor, _round_up(tm // 2, 8))

    grid = (pl.cdiv(n_rows, tm),)

    in_arrays = [x, params["w1p"], params["b1p"], params["w2p"], params["b2p"]]
    in_specs = [
        pl.BlockSpec((tm, n_input), lambda i: (i, 0)),   # row tile of x (pipelined)
        pl.BlockSpec((n_input, hp), lambda i: (0, 0)),   # W1: VMEM-resident
        pl.BlockSpec((1, hp), lambda i: (0, 0)),         # b1: VMEM-resident
        pl.BlockSpec((hp, op), lambda i: (0, 0)),        # W2: VMEM-resident
        pl.BlockSpec((1, op), lambda i: (0, 0)),         # b2: VMEM-resident
    ]
    if apply_dropout:
        if dropout_key is None:
            dropout_key = jax.random.PRNGKey(0)
        mask = make_dropout_mask(dropout_key, float(dropout_p), n_rows, hp)
        in_arrays.append(mask)
        in_specs.append(pl.BlockSpec((tm, hp), lambda i: (i, 0)))  # pipelined mask tile

    flops = 2 * n_rows * (n_input * hp + hp * op)
    bytes_accessed = (n_rows * n_input * x_bytes
                      + n_input * hp * w_bytes + hp * op * w_bytes + (hp + op) * 4
                      + n_rows * op * out_bytes
                      + (n_rows * hp * 4 if apply_dropout else 0))

    out = pl.pallas_call(
        _make_fe1_kernel(apply_dropout, compute_dtype),
        out_shape=jax.ShapeDtypeStruct((n_rows, op), out_dtype),
        grid=grid,
        in_specs=in_specs,
        out_specs=pl.BlockSpec((tm, op), lambda i: (i, 0)),
        compiler_params=pltpu.CompilerParams(
            dimension_semantics=("parallel",),   # row tiles shard across v7x's two TCs
            vmem_limit_bytes=int(budget),
        ),
        cost_estimate=pl.CostEstimate(
            flops=int(flops), transcendentals=0, bytes_accessed=int(bytes_accessed)),
    )(*in_arrays)

    return out if op == n_h1 else out[:, :n_h1]


def init_linear(key, fan_in, fan_out):
    """Mirror torch init: trunc_normal(std=1/sqrt(fan_in/2), a=-2std, b=2std), bias=0.1."""
    std = 1.0 / (fan_in / 2.0) ** 0.5
    w = std * jax.random.truncated_normal(
        key, lower=-2.0, upper=2.0, shape=(fan_out, fan_in), dtype=jnp.float32)
    b = jnp.full((fan_out,), 0.1, dtype=jnp.float32)
    return w, b


if __name__ == "__main__":
    key = jax.random.PRNGKey(0)
    kx, k1, k2, kd = jax.random.split(key, 4)

    N, n_input, n_hidden, dropout = 40, 32, (64, 48), 0.5
    x = jax.random.normal(kx, (N, n_input), dtype=jnp.float32)
    w1, b1 = init_linear(k1, n_input, n_hidden[0])
    w2, b2 = init_linear(k2, n_hidden[0], n_hidden[1])

    # One-time weight packing (transpose + 128-pad), hoisted out of the forward path.
    params = pack_fe1_params(w1, b1, w2, b2)

    def ref_forward(mask=None):
        # Plain-JAX reference mirroring the kernel's bf16-input / f32-accumulate math.
        h = jnp.dot(x.astype(jnp.bfloat16), w1.T.astype(jnp.bfloat16),
                    preferred_element_type=jnp.float32)
        h = jnp.maximum(h + b1, 0.0)
        if mask is not None:
            h = h * mask[:, : n_hidden[0]]
        o = jnp.dot(h.astype(jnp.bfloat16), w2.T.astype(jnp.bfloat16),
                    preferred_element_type=jnp.float32)
        return jnp.maximum(o + b2, 0.0)

    # Eval-style path (p=0 => dropout is identity). N=40 with tm=24 exercises a
    # multi-step grid with a partial last row block.
    out = jax.block_until_ready(fe1_forward(x, params, dropout_p=0.0))
    assert out.shape == (N, n_hidden[1])
    assert jnp.allclose(out, ref_forward(), atol=1e-2, rtol=1e-2)

    # Training-mode dropout (module uses functional F.dropout => training=True).
    # The mask is reproducible from the jax.random key, so the check is exact.
    # TODO(synk): torch's RNG stream itself cannot be reproduced; masks differ from torch.
    out_dp = jax.block_until_ready(
        fe1_forward(x, params, dropout_p=dropout, dropout_key=kd))
    mask = make_dropout_mask(kd, dropout, N, params["hp"])
    assert out_dp.shape == (N, n_hidden[1])
    assert jnp.allclose(out_dp, ref_forward(mask), atol=1e-2, rtol=1e-2)

    print("KERNEL_OK")
</pallas_src>

<mosaic_0001>
module attributes {stable_mosaic.version = 11 : i64} {
  func.func @kernel(%arg0: i32, %arg1: memref<24x32xf32, #tpu.memory_space<vmem>>, %arg2: memref<32x128xbf16, #tpu.memory_space<vmem>>, %arg3: memref<1x128xf32, #tpu.memory_space<vmem>>, %arg4: memref<128x128xbf16, #tpu.memory_space<vmem>>, %arg5: memref<1x128xf32, #tpu.memory_space<vmem>>, %arg6: memref<24x128xf32, #tpu.memory_space<vmem>>) attributes {dimension_semantics = [#tpu.dimension_semantics<parallel>], iteration_bounds = array<i64: 2>, scalar_prefetch = 0 : i64, scratch_operands = 0 : i64, tpu.core_type = #tpu.core_type<tc>, window_params = [{transform_indices = @transform_0, window_bounds = array<i64: 24, 32>}, {pipeline_mode = #tpu.pipeline_mode<synchronous>, transform_indices = @transform_1, window_bounds = array<i64: 32, 128>}, {pipeline_mode = #tpu.pipeline_mode<synchronous>, transform_indices = @transform_2, window_bounds = array<i64: 1, 128>}, {pipeline_mode = #tpu.pipeline_mode<synchronous>, transform_indices = @transform_3, window_bounds = array<i64: 128, 128>}, {pipeline_mode = #tpu.pipeline_mode<synchronous>, transform_indices = @transform_4, window_bounds = array<i64: 1, 128>}, {transform_indices = @transform_5, window_bounds = array<i64: 24, 128>}]} {
    %c0 = arith.constant 0 : index
    %c0_0 = arith.constant 0 : index
    %0 = vector.load %arg1[%c0, %c0_0] : memref<24x32xf32, #tpu.memory_space<vmem>>, vector<24x32xf32>
    %1 = arith.truncf %0 : vector<24x32xf32> to vector<24x32xbf16>
    %c0_1 = arith.constant 0 : index
    %c0_2 = arith.constant 0 : index
    %2 = vector.load %arg2[%c0_1, %c0_2] : memref<32x128xbf16, #tpu.memory_space<vmem>>, vector<32x128xbf16>
    %cst = arith.constant dense<0.000000e+00> : vector<24x128xf32>
    %3 = tpu.matmul %1, %2, %cst {dimension_numbers = #tpu.dot_dimension_numbers<[1], [0], [0], [1], [0, 0, 1, 1], [], []>} : vector<24x32xbf16>, vector<32x128xbf16>, vector<24x128xf32> -> vector<24x128xf32>
    %c0_3 = arith.constant 0 : index
    %c0_4 = arith.constant 0 : index
    %4 = vector.load %arg3[%c0_3, %c0_4] : memref<1x128xf32, #tpu.memory_space<vmem>>, vector<1x128xf32>
    %5 = vector.broadcast %4 : vector<1x128xf32> to vector<24x128xf32>
    %6 = arith.addf %3, %5 : vector<24x128xf32>
    %cst_5 = arith.constant 0.000000e+00 : f32
    %7 = vector.broadcast %cst_5 : f32 to vector<24x128xf32>
    %8 = arith.maximumf %6, %7 : vector<24x128xf32>
    %9 = arith.truncf %8 : vector<24x128xf32> to vector<24x128xbf16>
    %c0_6 = arith.constant 0 : index
    %c0_7 = arith.constant 0 : index
    %10 = vector.load %arg4[%c0_6, %c0_7] : memref<128x128xbf16, #tpu.memory_space<vmem>>, vector<128x128xbf16>
    %cst_8 = arith.constant dense<0.000000e+00> : vector<24x128xf32>
    %11 = tpu.matmul %9, %10, %cst_8 {dimension_numbers = #tpu.dot_dimension_numbers<[1], [0], [0], [1], [0, 0, 1, 1], [], []>} : vector<24x128xbf16>, vector<128x128xbf16>, vector<24x128xf32> -> vector<24x128xf32>
    %c0_9 = arith.constant 0 : index
    %c0_10 = arith.constant 0 : index
    %12 = vector.load %arg5[%c0_9, %c0_10] : memref<1x128xf32, #tpu.memory_space<vmem>>, vector<1x128xf32>
    %13 = vector.broadcast %12 : vector<1x128xf32> to vector<24x128xf32>
    %14 = arith.addf %11, %13 : vector<24x128xf32>
    %cst_11 = arith.constant 0.000000e+00 : f32
    %15 = vector.broadcast %cst_11 : f32 to vector<24x128xf32>
    %16 = arith.maximumf %14, %15 : vector<24x128xf32>
    %c0_12 = arith.constant 0 : index
    %c0_13 = arith.constant 0 : index
    %17 = vector.load %arg6[%c0_12, %c0_13] : memref<24x128xf32, #tpu.memory_space<vmem>>, vector<24x128xf32>
    tpu.vector_store %arg6[%c0_12, %c0_13], %16 {strides = array<i32>} : memref<24x128xf32, #tpu.memory_space<vmem>>, vector<24x128xf32>,
    return
  }
  func.func @transform_0(%arg0: i32) -> (i32, i32) {
    %c0_i32 = arith.constant 0 : i32
    %c0_i32_0 = arith.constant 0 : i32
    return %arg0, %c0_i32 : i32, i32
  }
  func.func @transform_1(%arg0: i32) -> (i32, i32) {
    %c0_i32 = arith.constant 0 : i32
    %c0_i32_0 = arith.constant 0 : i32
    %c0_i32_1 = arith.constant 0 : i32
    return %c0_i32, %c0_i32_0 : i32, i32
  }
  func.func @transform_2(%arg0: i32) -> (i32, i32) {
    %c0_i32 = arith.constant 0 : i32
    %c0_i32_0 = arith.constant 0 : i32
    %c0_i32_1 = arith.constant 0 : i32
    return %c0_i32, %c0_i32_0 : i32, i32
  }
  func.func @transform_3(%arg0: i32) -> (i32, i32) {
    %c0_i32 = arith.constant 0 : i32
    %c0_i32_0 = arith.constant 0 : i32
    %c0_i32_1 = arith.constant 0 : i32
    return %c0_i32, %c0_i32_0 : i32, i32
  }
  func.func @transform_4(%arg0: i32) -> (i32, i32) {
    %c0_i32 = arith.constant 0 : i32
    %c0_i32_0 = arith.constant 0 : i32
    %c0_i32_1 = arith.constant 0 : i32
    return %c0_i32, %c0_i32_0 : i32, i32
  }
  func.func @transform_5(%arg0: i32) -> (i32, i32) {
    %c0_i32 = arith.constant 0 : i32
    %c0_i32_0 = arith.constant 0 : i32
    return %arg0, %c0_i32 : i32, i32
  }
}

</mosaic_0001>

<llo_original>
// kernel: tpu_custom_call.1
$region0: #{tpu_custom_call.1}
  #allocation0 [shape = 'u32[]', space=smem, size = 0x4, offset = 0x4, fixed_abs, tag = 'smem constant byte address 0x4 - core index']
  #allocation1 [shape = 'u32[144,128]{1,0:T(1,128)}', space=vmem, size = 0x12000, scoped, tag = 'internal scratch']
  %s0 = inlined_call_operand.vmem [shape: f32[40,32], index: 0, kind: input, shape index: {}]
  %s1 = inlined_call_operand.hbm [shape: bf16[32,128], index: 1, kind: input, shape index: {}]
  %s2 = inlined_call_operand.vmem [shape: f32[1,128], index: 2, kind: input, shape index: {}]
  %s3 = inlined_call_operand.vmem [shape: bf16[128,128], index: 3, kind: input, shape index: {}]
  %s4 = inlined_call_operand.vmem [shape: f32[1,128], index: 4, kind: input, shape index: {}]
  %s5 = inlined_call_operand.hbm [shape: f32[40,128], index: 5, kind: output, shape index: {}]
  %s6 = sld [smem:[#allocation0]]
  $region57: #{tpu_custom_call.1} parent=0
    _
  %s8 = ssub.s32 1, %s6
  %s9 = scalar_select 0, %s8, %s6
  $region1: #{tpu_custom_call.1} parent=0
    #allocation2 [shape = 'u8[8192]{0}', space=vmem, size = 0x2000, scoped, tag = 'input window, operand 1, single buffered']
    #allocation3 [shape = 's32[2]{0}', space=sflag, size = 0x8, scoped, tag = 'scoped memory for tpu_custom_call.1']
    #allocation4 [shape = 's32[2]{0}', space=sflag, size = 0x8, scoped, tag = 'scoped memory for tpu_custom_call.1']
    #allocation5 [shape = 'u8[24576]{0}', space=vmem, size = 0x6000, scoped, tag = 'output window, operand 0']
    %10 = vsyncpa [#allocation3], 0
    %11 = vsyncpa [#allocation4], 0
    %s12 = scalar_lea.sflag [#allocation4], 1
    %13 = vsyncpa %s12, 0
    loop: start=0, step=1, limit=4
    $region2: #{tpu_custom_call.1} parent=1 // loop_pre_header
      _
    $region3: #{tpu_custom_call.1} parent=1 // loop_header
      %s15 = sphi 0, %s19
      %p16 = scmp.ge.s32.totalorder %s15, 4
      %s25 = sphi 0, %s27
      %s28 = sphi 0, %s25
      %s29 = sphi 0, %s28
      %s45 = sphi 0, %s29
      %s49 = sphi 0, %s49
      %s51 = sphi 0, %s49
      %s52 = sphi 0, %s51
      %s66 = sphi 0, %s52
      %s70 = sphi 0, %s70
      %s72 = sphi 0, %s70
      %s73 = sphi 0, %s72
      %s87 = sphi 0, %s73
      %s91 = sphi 0, %s91
      %s93 = sphi 0, %s91
      %s94 = sphi 0, %s93
      %s108 = sphi 0, %s94
      %s112 = sphi 0, %s112
      %s114 = sphi 0, %s112
      %s115 = sphi 0, %s114
      %s129 = sphi 0, %s115
      %s135 = sphi 0, %s137
      %s138 = sphi 0, %s135
      %s139 = sphi 0, %s138
      %s155 = sphi 0, %s139
    $region4: #{tpu_custom_call.1} parent=1 // loop_header_branch
      %18 = sbr.rel (%p16) target = $region8
    $region5: #{tpu_custom_call.1} parent=1 // loop_body
      %s20 = ssub.s32 %s15, 1
      %s21 = ssub.s32 %s15, 2
      %s22 = sadd.s32 %s15, 1
      %s23 = ssub.s32 %s15, %s22
      %p24 = scmp.eq.s32.totalorder %s23, 0
      %s26 = sadd.s32 %s25, 1
      %s27 = scalar_select %p24, %s25, %s26
      %p30 = pneg %p24
      %p31 = scmp.eq.s32.totalorder %s15, 1
      %p32 = por %p30, %p31
      %p33 = scmp.ne.s32.totalorder %s25, %s28
      %p34 = scmp.eq.s32.totalorder %s15, 0
      %p35 = por %p33, %p34
      %p36 = scmp.ne.s32.totalorder %s25, %s28
      %p37 = scmp.eq.s32.totalorder %s20, 1
      %p38 = por %p36, %p37
      %p39 = scmp.ne.s32.totalorder %s28, %s29
      %p40 = scmp.eq.s32.totalorder %s20, 0
      %p41 = por %p39, %p40
      %p42 = scmp.ne.s32.totalorder %s28, %s29
      %p43 = scmp.eq.s32.totalorder %s21, 1
      %p44 = por %p42, %p43
      %p46 = scmp.ne.s32.totalorder %s29, %s45
      %p47 = scmp.eq.s32.totalorder %s21, 0
      %p48 = por %p46, %p47
      %s50 = sadd.s32 %s49, 1
      %p53 = scmp.eq.s32.totalorder %s15, 1
      %p54 = scmp.ne.s32.totalorder %s49, %s51
      %p55 = scmp.eq.s32.totalorder %s15, 0
      %p56 = por %p54, %p55
      %p57 = scmp.ne.s32.totalorder %s49, %s51
      %p58 = scmp.eq.s32.totalorder %s20, 1
      %p59 = por %p57, %p58
      %p60 = scmp.ne.s32.totalorder %s51, %s52
      %p61 = scmp.eq.s32.totalorder %s20, 0
      %p62 = por %p60, %p61
      %p63 = scmp.ne.s32.totalorder %s51, %s52
      %p64 = scmp.eq.s32.totalorder %s21, 1
      %p65 = por %p63, %p64
      %p67 = scmp.ne.s32.totalorder %s52, %s66
      %p68 = scmp.eq.s32.totalorder %s21, 0
      %p69 = por %p67, %p68
      %s71 = sadd.s32 %s70, 1
      %p74 = scmp.eq.s32.totalorder %s15, 1
      %p75 = scmp.ne.s32.totalorder %s70, %s72
      %p76 = scmp.eq.s32.totalorder %s15, 0
      %p77 = por %p75, %p76
      %p78 = scmp.ne.s32.totalorder %s70, %s72
      %p79 = scmp.eq.s32.totalorder %s20, 1
      %p80 = por %p78, %p79
      %p81 = scmp.ne.s32.totalorder %s72, %s73
      %p82 = scmp.eq.s32.totalorder %s20, 0
      %p83 = por %p81, %p82
      %p84 = scmp.ne.s32.totalorder %s72, %s73
      %p85 = scmp.eq.s32.totalorder %s21, 1
      %p86 = por %p84, %p85
      %p88 = scmp.ne.s32.totalorder %s73, %s87
      %p89 = scmp.eq.s32.totalorder %s21, 0
      %p90 = por %p88, %p89
      %s92 = sadd.s32 %s91, 1
      %p95 = scmp.eq.s32.totalorder %s15, 1
      %p96 = scmp.ne.s32.totalorder %s91, %s93
      %p97 = scmp.eq.s32.totalorder %s15, 0
      %p98 = por %p96, %p97
      %p99 = scmp.ne.s32.totalorder %s91, %s93
      %p100 = scmp.eq.s32.totalorder %s20, 1
      %p101 = por %p99, %p100
      %p102 = scmp.ne.s32.totalorder %s93, %s94
      %p103 = scmp.eq.s32.totalorder %s20, 0
      %p104 = por %p102, %p103
      %p105 = scmp.ne.s32.totalorder %s93, %s94
      %p106 = scmp.eq.s32.totalorder %s21, 1
      %p107 = por %p105, %p106
      %p109 = scmp.ne.s32.totalorder %s94, %s108
      %p110 = scmp.eq.s32.totalorder %s21, 0
      %p111 = por %p109, %p110
      %s113 = sadd.s32 %s112, 1
      %p116 = scmp.eq.s32.totalorder %s15, 1
      %p117 = scmp.ne.s32.totalorder %s112, %s114
      %p118 = scmp.eq.s32.totalorder %s15, 0
      %p119 = por %p117, %p118
      %p120 = scmp.ne.s32.totalorder %s112, %s114
      %p121 = scmp.eq.s32.totalorder %s20, 1
      %p122 = por %p120, %p121
      %p123 = scmp.ne.s32.totalorder %s114, %s115
      %p124 = scmp.eq.s32.totalorder %s20, 0
      %p125 = por %p123, %p124
      %p126 = scmp.ne.s32.totalorder %s114, %s115
      %p127 = scmp.eq.s32.totalorder %s21, 1
      %p128 = por %p126, %p127
      %p130 = scmp.ne.s32.totalorder %s115, %s129
      %p131 = scmp.eq.s32.totalorder %s21, 0
      %p132 = por %p130, %p131
      %s133 = ssub.s32 %s15, %s22
      %p134 = scmp.eq.s32.totalorder %s133, 0
      %s136 = sadd.s32 %s135, 1
      %s137 = scalar_select %p134, %s135, %s136
      %p140 = pneg %p134
      %p141 = scmp.eq.s32.totalorder %s15, 1
      %p142 = por %p140, %p141
      %p143 = scmp.ne.s32.totalorder %s135, %s138
      %p144 = scmp.eq.s32.totalorder %s15, 0
      %p145 = por %p143, %p144
      %p146 = scmp.ne.s32.totalorder %s135, %s138
      %p147 = scmp.eq.s32.totalorder %s20, 1
      %p148 = por %p146, %p147
      %p149 = scmp.ne.s32.totalorder %s138, %s139
      %p150 = scmp.eq.s32.totalorder %s20, 0
      %p151 = por %p149, %p150
      %p152 = scmp.ne.s32.totalorder %s138, %s139
      %p153 = scmp.eq.s32.totalorder %s21, 1
      %p154 = por %p152, %p153
      %p156 = scmp.ne.s32.totalorder %s139, %s155
      %p157 = scmp.eq.s32.totalorder %s21, 0
      %p158 = por %p156, %p157
      %p159 = scmp.le.s32.totalorder 1, %s15
      %p160 = scmp.lt.s32.totalorder %s15, 3
      %p161 = pnand %p159, %p160
      %p162 = pneg %p161
      // Predicated region
      $region9: #{tpu_custom_call.1} parent=5 // pred_check
        _
      $region10: #{tpu_custom_call.1} parent=5 // pred_check_branch
        %164 = sbr.rel (%p161) target = $region12
      $region11: #{tpu_custom_call.1} parent=5 // pred_region
        %s165 = ssub.s32 %s15, 1
        // Predicated region
        $region13: #{tpu_custom_call.1} parent=11 // pred_check
          %p166 = pneg %p62
        $region14: #{tpu_custom_call.1} parent=11 // pred_check_branch
          %168 = sbr.rel (%p166) target = $region16
        $region15: #{tpu_custom_call.1} parent=11 // pred_region
          %s170 = ssub.s32 256, 256
          %171 = vsyncadd [#allocation3], %s170
          %s172 = sshll.u32 [#allocation2], 4
          %s173 = int_to_ptr.vmem [resolvable:$true] %s172
          %178 = dma.hbm_to_vmem [thread:$0]  %s1, 256, %s173, [#allocation3], 64, 64, 4
        $region16: #{tpu_custom_call.1} parent=11 // pred_fallthru
          _
        // Predicated region
        $region17: #{tpu_custom_call.1} parent=11 // pred_check
          %p179 = pneg %p83
        $region18: #{tpu_custom_call.1} parent=11 // pred_check_branch
          %181 = sbr.rel (%p179) target = $region20
        $region19: #{tpu_custom_call.1} parent=11 // pred_region
          _
        $region20: #{tpu_custom_call.1} parent=11 // pred_fallthru
          _
        // Predicated region
        $region21: #{tpu_custom_call.1} parent=11 // pred_check
          %p182 = pneg %p104
        $region22: #{tpu_custom_call.1} parent=11 // pred_check_branch
          %184 = sbr.rel (%p182) target = $region24
        $region23: #{tpu_custom_call.1} parent=11 // pred_region
          _
        $region24: #{tpu_custom_call.1} parent=11 // pred_fallthru
          _
        // Predicated region
        $region25: #{tpu_custom_call.1} parent=11 // pred_check
          %p185 = pneg %p125
        $region26: #{tpu_custom_call.1} parent=11 // pred_check_branch
          %187 = sbr.rel (%p185) target = $region28
        $region27: #{tpu_custom_call.1} parent=11 // pred_region
          _
        $region28: #{tpu_custom_call.1} parent=11 // pred_fallthru
          _
      $region12: #{tpu_custom_call.1} parent=5 // pred_fallthru
        _
      %p188 = scmp.lt.s32.totalorder %s15, 2
      // Predicated region
      $region29: #{tpu_custom_call.1} parent=5 // pred_check
        %p189 = pneg %p188
      $region30: #{tpu_custom_call.1} parent=5 // pred_check_branch
        %191 = sbr.rel (%p189) target = $region32
      $region31: #{tpu_custom_call.1} parent=5 // pred_region
        // Predicated region
        $region33: #{tpu_custom_call.1} parent=31 // pred_check
          %p192 = pneg %p35
        $region34: #{tpu_custom_call.1} parent=31 // pred_check_branch
          %194 = sbr.rel (%p192) target = $region36
        $region35: #{tpu_custom_call.1} parent=31 // pred_region
          %s195 = smul.u32 3, %s15
          %s196 = ssub.s32 5, %s195
          %p197 = scmp.lt.s32.totalorder %s196, 3
          %s198 = scalar_select %p197, %s196, 3
          %s199 = smul.u32 128, %s198
          %p200 = scmp.lt.s32.totalorder %s195, 4
          %s201 = scalar_select %p200, %s195, 4
          %s202 = smul.addr %s201, 8
          %s203 = scalar_lea.vmem %s0, %s202
          %s204 = smul.u32 3, %s15
          %s205 = ssub.s32 5, %s204
          %p206 = scmp.lt.s32.totalorder %s205, 3
          %s207 = scalar_select %p206, %s205, 3
          %s208 = smul.u32 128, %s207
        $region36: #{tpu_custom_call.1} parent=31 // pred_fallthru
          _
      $region32: #{tpu_custom_call.1} parent=5 // pred_fallthru
        _
      %p209 = scmp.le.s32.totalorder 1, %s15
      %p210 = scmp.lt.s32.totalorder %s15, 3
      %p211 = pnand %p209, %p210
      %p212 = pneg %p211
      // Predicated region
      $region37: #{tpu_custom_call.1} parent=5 // pred_check
        _
      $region38: #{tpu_custom_call.1} parent=5 // pred_check_branch
        %214 = sbr.rel (%p211) target = $region40
      $region39: #{tpu_custom_call.1} parent=5 // pred_region
        %s215 = ssub.s32 %s15, 1
        // Predicated region
        $region41: #{tpu_custom_call.1} parent=39 // pred_check
          %p216 = pneg %p62
        $region42: #{tpu_custom_call.1} parent=39 // pred_check_branch
          %218 = sbr.rel (%p216) target = $region44
        $region43: #{tpu_custom_call.1} parent=39 // pred_region
          %219 = dma.done [#allocation3], 256
        $region44: #{tpu_custom_call.1} parent=39 // pred_fallthru
          _
        %s220 = smul.u32 3, %s20
        %s221 = ssub.s32 5, %s220
        %p222 = scmp.lt.s32.totalorder %s221, 3
        %s223 = scalar_select %p222, %s221, 3
        %s224 = smul.u32 128, %s223
        %p225 = scmp.lt.s32.totalorder %s220, 4
        %s226 = scalar_select %p225, %s220, 4
        %s227 = smul.addr %s226, 8
        %s228 = scalar_lea.vmem %s0, %s227
        %p229 = pneg %p41
        %p230 = pneg %p38
        %p231 = pneg %p62
        %p232 = pneg %p59
        %p233 = pneg %p83
        %p234 = pneg %p80
        %p235 = pneg %p104
        %p236 = pneg %p101
        %p237 = pneg %p125
        %p238 = pneg %p122
        %p239 = pneg %p151
        %p240 = pneg %p148
        %s241 = sand.u32 %s138, 1
        %s242 = scalar_lea.sflag [#allocation4], %s241
        %s243 = sand.u32 %s138, 1
        %s244 = smul.addr %s243, 24
        %s245 = scalar_lea.vmem [#allocation5], %s244
        %s246 = smul.u32 3, %s20
        %s247 = ssub.s32 5, %s246
        %p248 = scmp.lt.s32.totalorder %s247, 3
        %s249 = scalar_select %p248, %s247, 3
        %s250 = smul.u32 128, %s249
        %p251 = scmp.lt.s32.totalorder %s246, 4
        %s252 = scalar_select %p251, %s246, 4
        %s253 = smul.addr %s252, 8
        %s254 = scalar_lea.vmem %s0, %s253
        %s255 = smul.u32 3, %s20
        %s256 = ssub.s32 5, %s255
        %p257 = scmp.lt.s32.totalorder %s256, 3
        %s258 = scalar_select %p257, %s256, 3
        %s259 = smul.u32 128, %s258
        %s260 = smul.u32 3, %s20
        %s261 = ssub.s32 5, %s260
        %p262 = scmp.lt.s32.totalorder %s261, 3
        %s263 = scalar_select %p262, %s261, 3
        %s264 = smul.u32 128, %s263
        %v266 = vld [vmem:[%s254] sm:$0xff]
        %v267 = vld [vmem:[%s254 + $0x8] sm:$0xff]
        %v268 = vld [vmem:[%s254 + $0x10] sm:$0xff]
        %v269 = vpack.c.bf16 %v267, %v266
        %v270 = vpack.c.bf16 %v268, %v268
        %v271 = vld [vmem:[#allocation2] sm:$0xf]
        %v272 = vld [vmem:[#allocation2 + $0x4] sm:$0xf]
        %v273 = vld [vmem:[#allocation2 + $0x8] sm:$0xf]
        %v274 = vld [vmem:[#allocation2 + $0xc] sm:$0xf]
        %v275 = vld [vmem:[%s2] sm:$0x1]
        %v277 = vlaneseq
        %v278 = vshrl.u32 %v277, 7
        %v279 = vsub.s32 0, %v278
        %v280 = vrot.slane %v275, %v279
        %v286 = vunpack.c.l.b16 %v271
        %v287 = vunpack.c.l.b16 %v272
        %v288 = vunpack.c.l.b16 %v273
        %v289 = vunpack.c.l.b16 %v274
        %v290 = vpack.c.b16 %v287, %v286
        %v291 = vpack.c.b16 %v289, %v288
        %vm294 = vcmask 261120
        %v296 = vsel %vm294, %v269, 0
        %v299 = vsel %vm294, %v270, 0
        %301 = vmatprep.subr.bf16.mxu0 0
        %302 = vmatpush1.bf16.msra.mxu0 0
        %303 = vmatprep.subr.bf16.mxu0 0
        %304 = vmatpush1.bf16.msra.mxu0 0
        %305 = vmatprep.subr.bf16.mxu0 0
        %306 = vmatpush1.bf16.msra.mxu0 0
        %307 = vmatprep.subr.bf16.mxu0 0
        %308 = vmatpush1.bf16.msra.mxu0 0
        %309 = vmatprep.subr.bf16.mxu0 0
        %310 = vmatpush1.bf16.msra.mxu0 0
        %311 = vmatprep.subr.bf16.mxu0 0
        %312 = vmatpush1.bf16.msra.mxu0 0
        %313 = vmatprep.subr.bf16.mxu0 0
        %314 = vmatpush1.bf16.msra.mxu0 %v291
        %315 = vmatprep.subr.bf16.mxu0 0
        %316 = vmatpush1.bf16.msra.mxu0 %v290
        %317 = vmatprep.subr.bf16.mxu0 0
        %318 = vmatpush2.bf16.msra.mxu0 0
        %319 = vmatprep.subr.bf16.mxu0 0
        %320 = vmatpush2.bf16.msra.mxu0 0
        %321 = vmatprep.subr.bf16.mxu0 0
        %322 = vmatpush2.bf16.msra.mxu0 0
        %323 = vmatprep.subr.bf16.mxu0 0
        %324 = vmatpush2.bf16.msra.mxu0 0
        %325 = vmatprep.subr.bf16.mxu0 0
        %326 = vmatpush2.bf16.msra.mxu0 0
        %327 = vmatprep.subr.bf16.mxu0 0
        %328 = vmatpush2.bf16.msra.mxu0 0
        %329 = vmatprep.subr.bf16.mxu0 0
        %330 = vmatpush2.bf16.msra.mxu0 0
        %331 = vmatprep.subr.bf16.mxu0 0
        %332 = vmatpush2.bf16.msra.mxu0 0
        %333 = vmatprep.mubr.bf16.mxu0 0
        %334 = vmatmul.mubr.bf16.gmra.mxu0 %v296
        %v335 = vpop.f32.mrf.mxu0
        %v336 = vadd.f32 %v280, %v335
        %v337 = vpop.f32.mrf.mxu0
        %v338 = vpop.f32.mrf.mxu0
        %v339 = vadd.f32 %v280, %v338
        %v340 = vpop.f32.mrf.mxu0
        %341 = vmatprep.mubr.bf16.mxu0 0
        %342 = vmatmul.mubr.bf16.gmra.mxu0 %v299
        %v343 = vpop.f32.mrf.mxu0
        %v344 = vadd.f32 %v280, %v343
        %v345 = vpop.f32.mrf.mxu0
        %v346 = vpop.f32.mrf.mxu0
        %v347 = vpop.f32.mrf.mxu0
        %348 = vdwg.mxu0
        %v349 = vmax.f32 %v336, 0.0
        %v350 = vmax.f32 %v339, 0.0
        %v351 = vmax.f32 %v344, 0.0
        %v352 = vpack.c.bf16 %v350, %v349
        %v353 = vpack.c.bf16 %v351, %v351
        %v354 = vld [vmem:[%s3] sm:$0xf]
        %v355 = vld [vmem:[%s3 + $0x4] sm:$0xf]
        %v356 = vld [vmem:[%s3 + $0x8] sm:$0xf]
        %v357 = vld [vmem:[%s3 + $0xc] sm:$0xf]
        %v358 = vld [vmem:[%s3 + $0x10] sm:$0xf]
        %v359 = vld [vmem:[%s3 + $0x14] sm:$0xf]
        %v360 = vld [vmem:[%s3 + $0x18] sm:$0xf]
        %v361 = vld [vmem:[%s3 + $0x1c] sm:$0xf]
        %v362 = vld [vmem:[%s3 + $0x20] sm:$0xf]
        %v363 = vld [vmem:[%s3 + $0x24] sm:$0xf]
        %v364 = vld [vmem:[%s3 + $0x28] sm:$0xf]
        %v365 = vld [vmem:[%s3 + $0x2c] sm:$0xf]
        %v366 = vld [vmem:[%s3 + $0x30] sm:$0xf]
        %v367 = vld [vmem:[%s3 + $0x34] sm:$0xf]
        %v368 = vld [vmem:[%s3 + $0x38] sm:$0xf]
        %v369 = vld [vmem:[%s3 + $0x3c] sm:$0xf]
        %v370 = vld [vmem:[%s4] sm:$0x1]
        %v372 = vlaneseq
        %v373 = vshrl.u32 %v372, 7
        %v374 = vsub.s32 0, %v373
        %v375 = vrot.slane %v370, %v374
        %v393 = vunpack.c.l.b16 %v354
        %v394 = vunpack.c.l.b16 %v355
        %v395 = vunpack.c.l.b16 %v356
        %v396 = vunpack.c.l.b16 %v357
        %v397 = vunpack.c.l.b16 %v358
        %v398 = vunpack.c.l.b16 %v359
        %v399 = vunpack.c.l.b16 %v360
        %v400 = vunpack.c.l.b16 %v361
        %v401 = vunpack.c.l.b16 %v362
        %v402 = vunpack.c.l.b16 %v363
        %v403 = vunpack.c.l.b16 %v364
        %v404 = vunpack.c.l.b16 %v365
        %v405 = vunpack.c.l.b16 %v366
        %v406 = vunpack.c.l.b16 %v367
        %v407 = vunpack.c.l.b16 %v368
        %v408 = vunpack.c.l.b16 %v369
        %v409 = vpack.c.b16 %v394, %v393
        %v410 = vpack.c.b16 %v396, %v395
        %v411 = vpack.c.b16 %v398, %v397
        %v412 = vpack.c.b16 %v400, %v399
        %v413 = vpack.c.b16 %v402, %v401
        %v414 = vpack.c.b16 %v404, %v403
        %v415 = vpack.c.b16 %v406, %v405
        %v416 = vpack.c.b16 %v408, %v407
        %425 = vmatprep.subr.bf16.mxu0 0
        %426 = vmatpush1.bf16.msra.mxu0 %v416
        %427 = vmatprep.subr.bf16.mxu0 0
        %428 = vmatpush1.bf16.msra.mxu0 %v415
        %429 = vmatprep.subr.bf16.mxu0 0
        %430 = vmatpush1.bf16.msra.mxu0 %v414
        %431 = vmatprep.subr.bf16.mxu0 0
        %432 = vmatpush1.bf16.msra.mxu0 %v413
        %433 = vmatprep.subr.bf16.mxu0 0
        %434 = vmatpush1.bf16.msra.mxu0 %v412
        %435 = vmatprep.subr.bf16.mxu0 0
        %436 = vmatpush1.bf16.msra.mxu0 %v411
        %437 = vmatprep.subr.bf16.mxu0 0
        %438 = vmatpush1.bf16.msra.mxu0 %v410
        %439 = vmatprep.subr.bf16.mxu0 0
        %440 = vmatpush1.bf16.msra.mxu0 %v409
        %441 = vmatprep.subr.bf16.mxu0 0
        %442 = vmatpush2.bf16.msra.mxu0 0
        %443 = vmatprep.subr.bf16.mxu0 0
        %444 = vmatpush2.bf16.msra.mxu0 0
        %445 = vmatprep.subr.bf16.mxu0 0
        %446 = vmatpush2.bf16.msra.mxu0 0
        %447 = vmatprep.subr.bf16.mxu0 0
        %448 = vmatpush2.bf16.msra.mxu0 0
        %449 = vmatprep.subr.bf16.mxu0 0
        %450 = vmatpush2.bf16.msra.mxu0 0
        %451 = vmatprep.subr.bf16.mxu0 0
        %452 = vmatpush2.bf16.msra.mxu0 0
        %453 = vmatprep.subr.bf16.mxu0 0
        %454 = vmatpush2.bf16.msra.mxu0 0
        %455 = vmatprep.subr.bf16.mxu0 0
        %456 = vmatpush2.bf16.msra.mxu0 0
        %457 = vmatprep.mubr.bf16.mxu0 0
        %458 = vmatmul.mubr.bf16.gmra.mxu0 %v352
        %v459 = vpop.f32.mrf.mxu0
        %v460 = vadd.f32 %v375, %v459
        %v461 = vpop.f32.mrf.mxu0
        %v462 = vpop.f32.mrf.mxu0
        %v463 = vadd.f32 %v375, %v462
        %v464 = vpop.f32.mrf.mxu0
        %465 = vmatprep.mubr.bf16.mxu0 0
        %466 = vmatmul.mubr.bf16.gmra.mxu0 %v353
        %v467 = vpop.f32.mrf.mxu0
        %v468 = vadd.f32 %v375, %v467
        %v469 = vpop.f32.mrf.mxu0
        %v470 = vpop.f32.mrf.mxu0
        %v471 = vpop.f32.mrf.mxu0
        %472 = vdwg.mxu0
        %v473 = vmax.f32 %v460, 0.0
        %v474 = vmax.f32 %v463, 0.0
        %v475 = vmax.f32 %v468, 0.0
        %476 = vst [vmem:[%s245] sm:$0xff] %v473
        %477 = vst [vmem:[%s245 + $0x8] sm:$0xff] %v474
        %478 = vst [vmem:[%s245 + $0x10] sm:$0xff] %v475
        %s479 = sand.u32 %s138, 1
        %s480 = scalar_lea.sflag [#allocation4], %s479
        %s481 = sand.u32 %s138, 1
        %s482 = smul.addr %s481, 24
        %s483 = scalar_lea.vmem [#allocation5], %s482
        // Predicated region
        $region45: #{tpu_custom_call.1} parent=39 // pred_check
          %p484 = pneg %p148
        $region46: #{tpu_custom_call.1} parent=39 // pred_check_branch
          %486 = sbr.rel (%p484) target = $region48
        $region47: #{tpu_custom_call.1} parent=39 // pred_region
          %s487 = smul.u32 3, %s20
          %s488 = ssub.s32 5, %s487
          %p489 = scmp.lt.s32.totalorder %s488, 3
          %s490 = scalar_select %p489, %s488, 3
          %s491 = smul.u32 128, %s490
          %s493 = ssub.s32 384, %s491
          %494 = vsyncadd %s480, %s493
          %p495 = scmp.ne.s32.totalorder 0, %s491
          %s496 = smul.addr %s487, 128
          %s497 = scalar_lea.hbm %s5, %s496
          %s498 = smul.u32 8, %s490
          %s499 = sshll.u32 %s483, 4
          %s500 = int_to_ptr.vmem [resolvable:$true] %s499
          %s501 = sshll.u32 %s498, 4
          %505 = dma.vmem_to_hbm [thread:$0]  (%p495), %s500, %s501, %s497, %s480, 128, 128, 8
        $region48: #{tpu_custom_call.1} parent=39 // pred_fallthru
          _
      $region40: #{tpu_custom_call.1} parent=5 // pred_fallthru
        _
      %p506 = scmp.le.s32.totalorder 2, %s15
      // Predicated region
      $region49: #{tpu_custom_call.1} parent=5 // pred_check
        %p507 = pneg %p506
      $region50: #{tpu_custom_call.1} parent=5 // pred_check_branch
        %509 = sbr.rel (%p507) target = $region52
      $region51: #{tpu_custom_call.1} parent=5 // pred_region
        %s510 = ssub.s32 %s15, 2
        // Predicated region
        $region53: #{tpu_custom_call.1} parent=51 // pred_check
          %p511 = pneg %p154
        $region54: #{tpu_custom_call.1} parent=51 // pred_check_branch
          %513 = sbr.rel (%p511) target = $region56
        $region55: #{tpu_custom_call.1} parent=51 // pred_region
          %s514 = sand.u32 %s139, 1
          %s515 = scalar_lea.sflag [#allocation4], %s514
          %s516 = sand.u32 %s139, 1
          %s517 = smul.addr %s516, 24
          %s518 = scalar_lea.vmem [#allocation5], %s517
          %519 = dma.done %s515, 384
        $region56: #{tpu_custom_call.1} parent=51 // pred_fallthru
          _
      $region52: #{tpu_custom_call.1} parent=5 // pred_fallthru
        _
    $region6: #{tpu_custom_call.1} parent=1 // loop_footer
      %s19 = sadd.s32 1, %s15
    $region7: #{tpu_custom_call.1} parent=1 // loop_footer_branch
      %14 = sbr.rel target = $region3
    $region8: #{tpu_custom_call.1} parent=1 // loop_exit
      _
    %520 = vsyncpa [#allocation3], 1
    %s521 = scalar_lea.sflag [#allocation3], 1
    %522 = vsyncpa %s521, 1
    %523 = vsyncpa [#allocation4], 1
    %s524 = scalar_lea.sflag [#allocation4], 1
    %525 = vsyncpa %s524, 1

</llo_original>
